<compile_context>
chip_gen: v7x
topology: tpu7x:2x2x1
jax: 0.10.0
libtpu: 0.0.40
codegen_flags: <defaults>
</compile_context>

<pallas_src>
import numpy as np
import jax
import jax.numpy as jnp
from jax.experimental import pallas as pl
from jax.experimental.pallas import tpu as pltpu


# ---------------- Morlet mother wavelet (pycwt-compatible, f0 = 6) ----------
_F0 = 6.0


def _morlet_flambda() -> float:
    return (4.0 * np.pi) / (_F0 + np.sqrt(2.0 + _F0 ** 2))


def _morlet_psi_ft(f: np.ndarray) -> np.ndarray:
    return (np.pi ** -0.25) * np.exp(-0.5 * (f - _F0) ** 2)


def make_psi_ft_bar(n0: int, dt: float = 1.0, dj: float = 1.0 / 12) -> np.ndarray:
    """Deterministic construction of Cwt.psi_ft_bar (real-valued for Morlet)."""
    s0 = 2.0 * dt / _morlet_flambda()
    J = int(np.round(np.log2(n0 * dt / s0) / dj))
    sj = s0 * 2.0 ** (np.arange(0, J + 1) * dj)
    N = n0
    ftfreqs = 2.0 * np.pi * np.fft.fftfreq(N, dt)
    sj_col = sj[:, np.newaxis]
    psi_ft_bar = (sj_col * ftfreqs[1] * N) ** 0.5 * np.conjugate(
        _morlet_psi_ft(sj_col * ftfreqs)
    )
    # Morlet psi_ft is real => psi_ft_bar is real (matches torch .type_as(x)).
    return np.real(psi_ft_bar).astype(np.float32)  # (n_scales, n0)


def make_dft_table(N: int) -> np.ndarray:
    """W = [C | S] of shape (N, 2N) with C/S the DFT cosine/sine matrices.

    Forward DFT:   X = x @ C  - i * (x @ S)
    Inverse DFT:   y = (z @ C + i * z @ S) / N   (for complex z, split re/im)
    """
    k = np.arange(N)
    kn = np.outer(k, k) % N
    ang = 2.0 * np.pi * kn.astype(np.float64) / N
    C = np.cos(ang)
    S = np.sin(ang)
    return np.concatenate([C, S], axis=1).astype(np.float32)  # (N, 2N)


# ------------------------------- kernel -------------------------------------
def _cwt_kernel(x_ref, w_ref, psi_ref, yre_ref, yim_ref):
    B, N = x_ref.shape           # (4, 128)
    S = psi_ref.shape[0]         # padded scale count (multiple of 8)
    inv_n = jnp.float32(1.0 / N)

    W = w_ref[...]               # (N, 2N) bf16, [C | S]

    # Forward DFT of the (real) input:  x @ [C | S] = [x@C | x@S].
    x = x_ref[...].astype(jnp.bfloat16)                          # (B, N)
    X = jnp.dot(x, W, preferred_element_type=jnp.float32)        # (B, 2N)
    Xre = X[:, :N]                                               # (B, N)
    Xim = -X[:, N:]                                              # (B, N)

    psi = psi_ref[...]                                           # (S, N) f32, real

    # Fuse batch x scale into one M dimension (M = B*S ~ 320).
    Zre = (Xre[:, None, :] * psi[None, :, :]).reshape(B * S, N).astype(jnp.bfloat16)
    Zim = (Xim[:, None, :] * psi[None, :, :]).reshape(B * S, N).astype(jnp.bfloat16)

    # Inverse DFT: two well-shaped (B*S, N) @ (N, 2N) MXU matmuls.
    Pre = jnp.dot(Zre, W, preferred_element_type=jnp.float32)    # [zre@C | zre@S]
    Pim = jnp.dot(Zim, W, preferred_element_type=jnp.float32)    # [zim@C | zim@S]

    # y = (zre + i*zim)(cos + i*sin)/N
    yre_ref[...] = (Pre[:, :N] - Pim[:, N:]) * inv_n
    yim_ref[...] = (Pre[:, N:] + Pim[:, :N]) * inv_n


# ------------------------------ wrapper --------------------------------------
def cwt_pallas(x, psi, w_bf16):
    """x: (B, n0) float32, psi: (n_scales, n0) f32, w_bf16: (n0, 2*n0) bf16
    -> (B, n_scales, n0) complex64."""
    B, N = x.shape
    S = psi.shape[0]
    S_pad = ((S + 7) // 8) * 8                 # sublane-align the scale axis
    psi_p = jnp.pad(psi, ((0, S_pad - S), (0, 0)))
    M = B * S_pad

    yre, yim = pl.pallas_call(
        _cwt_kernel,
        out_shape=(
            jax.ShapeDtypeStruct((M, N), jnp.float32),
            jax.ShapeDtypeStruct((M, N), jnp.float32),
        ),
        grid_spec=pltpu.PrefetchScalarGridSpec(
            num_scalar_prefetch=0,
            grid=(1,),                          # whole problem in one invocation
            in_specs=[
                pl.BlockSpec((B, N), lambda i: (0, 0)),         # x
                pl.BlockSpec((N, 2 * N), lambda i: (0, 0)),     # W = [C | S] bf16
                pl.BlockSpec((S_pad, N), lambda i: (0, 0)),     # psi bank
            ],
            out_specs=(
                pl.BlockSpec((M, N), lambda i: (0, 0)),         # Re(y) slab
                pl.BlockSpec((M, N), lambda i: (0, 0)),         # Im(y) slab
            ),
        ),
        compiler_params=pltpu.CompilerParams(
            dimension_semantics=("arbitrary",),
        ),
    )(x, w_bf16, psi_p)

    yre = yre.reshape(B, S_pad, N)[:, :S, :]
    yim = yim.reshape(B, S_pad, N)[:, :S, :]
    return (yre + 1j * yim).astype(jnp.complex64)


def pow2pad(x, n0):
    pad = n0 - x.shape[-1]
    return jnp.pad(x, ((0, 0), (0, pad)))


# ------------------------------ main -----------------------------------------
if __name__ == "__main__":
    n0 = 128          # must be a power of 2
    B = 4

    key = jax.random.PRNGKey(0)
    x = jax.random.normal(key, (B, n0), dtype=jnp.float32)

    psi_np = make_psi_ft_bar(n0)                  # (n_scales, n0) float32
    w_np = make_dft_table(n0)                     # (n0, 2*n0) float32

    y = cwt_pallas(
        pow2pad(x, n0),
        jnp.asarray(psi_np),
        jnp.asarray(w_np).astype(jnp.bfloat16),
    )
    y = jax.block_until_ready(y)

    # numpy reference with the exact torch-forward semantics
    x_np = np.asarray(x, dtype=np.float32)
    x_ft = np.fft.fft(x_np, axis=-1)[:, None, :]
    ref = np.fft.ifft(x_ft * psi_np[None, :, :], axis=-1)

    assert y.shape == (B, psi_np.shape[0], n0), y.shape
    err = np.max(np.abs(np.asarray(y) - ref))
    scale = np.max(np.abs(ref)) + 1.0
    assert err < 5e-2 * scale, f"max abs err {err} (scale {scale})"

    print("KERNEL_OK")
</pallas_src>

<mosaic_0001>
module attributes {stable_mosaic.version = 11 : i64} {
  func.func @_cwt_kernel(%arg0: i32, %arg1: memref<4x128xf32, #tpu.memory_space<vmem>>, %arg2: memref<128x256xbf16, #tpu.memory_space<vmem>>, %arg3: memref<80x128xf32, #tpu.memory_space<vmem>>, %arg4: memref<320x128xf32, #tpu.memory_space<vmem>>, %arg5: memref<320x128xf32, #tpu.memory_space<vmem>>) attributes {dimension_semantics = [#tpu.dimension_semantics<arbitrary>], iteration_bounds = array<i64: 1>, scalar_prefetch = 0 : i64, scratch_operands = 0 : i64, tpu.core_type = #tpu.core_type<tc>, window_params = [{pipeline_mode = #tpu.pipeline_mode<synchronous>, transform_indices = @transform_0, window_bounds = array<i64: 4, 128>}, {pipeline_mode = #tpu.pipeline_mode<synchronous>, transform_indices = @transform_1, window_bounds = array<i64: 128, 256>}, {pipeline_mode = #tpu.pipeline_mode<synchronous>, transform_indices = @transform_2, window_bounds = array<i64: 80, 128>}, {pipeline_mode = #tpu.pipeline_mode<synchronous>, transform_indices = @transform_3, window_bounds = array<i64: 320, 128>}, {pipeline_mode = #tpu.pipeline_mode<synchronous>, transform_indices = @transform_4, window_bounds = array<i64: 320, 128>}]} {
    %c0 = arith.constant 0 : index
    %c0_0 = arith.constant 0 : index
    %0 = vector.load %arg2[%c0, %c0_0] : memref<128x256xbf16, #tpu.memory_space<vmem>>, vector<128x256xbf16>
    %c0_1 = arith.constant 0 : index
    %c0_2 = arith.constant 0 : index
    %1 = vector.load %arg1[%c0_1, %c0_2] : memref<4x128xf32, #tpu.memory_space<vmem>>, vector<4x128xf32>
    %2 = arith.truncf %1 : vector<4x128xf32> to vector<4x128xbf16>
    %cst = arith.constant dense<0.000000e+00> : vector<4x256xf32>
    %3 = tpu.matmul %2, %0, %cst {dimension_numbers = #tpu.dot_dimension_numbers<[1], [0], [0], [1], [0, 0, 1, 1], [], []>} : vector<4x128xbf16>, vector<128x256xbf16>, vector<4x256xf32> -> vector<4x256xf32>
    %4 = vector.extract_strided_slice %3 {offsets = [0, 0], sizes = [4, 128], strides = [1, 1]} : vector<4x256xf32> to vector<4x128xf32>
    %5 = vector.extract_strided_slice %3 {offsets = [0, 128], sizes = [4, 128], strides = [1, 1]} : vector<4x256xf32> to vector<4x128xf32>
    %cst_3 = arith.constant 0.000000e+00 : f32
    %6 = vector.broadcast %cst_3 : f32 to vector<4x128xf32>
    %7 = arith.subf %6, %5 : vector<4x128xf32>
    %c0_4 = arith.constant 0 : index
    %c0_5 = arith.constant 0 : index
    %8 = vector.load %arg3[%c0_4, %c0_5] : memref<80x128xf32, #tpu.memory_space<vmem>>, vector<80x128xf32>
    %9 = vector.shape_cast %4 : vector<4x128xf32> to vector<4x1x128xf32>
    %10 = vector.shape_cast %8 : vector<80x128xf32> to vector<1x80x128xf32>
    %11 = vector.broadcast %9 : vector<4x1x128xf32> to vector<4x80x128xf32>
    %12 = vector.broadcast %10 : vector<1x80x128xf32> to vector<4x80x128xf32>
    %13 = arith.mulf %11, %12 : vector<4x80x128xf32>
    %14 = vector.shape_cast %13 : vector<4x80x128xf32> to vector<320x128xf32>
    %15 = arith.truncf %14 : vector<320x128xf32> to vector<320x128xbf16>
    %16 = vector.shape_cast %7 : vector<4x128xf32> to vector<4x1x128xf32>
    %17 = vector.shape_cast %8 : vector<80x128xf32> to vector<1x80x128xf32>
    %18 = vector.broadcast %16 : vector<4x1x128xf32> to vector<4x80x128xf32>
    %19 = vector.broadcast %17 : vector<1x80x128xf32> to vector<4x80x128xf32>
    %20 = arith.mulf %18, %19 : vector<4x80x128xf32>
    %21 = vector.shape_cast %20 : vector<4x80x128xf32> to vector<320x128xf32>
    %22 = arith.truncf %21 : vector<320x128xf32> to vector<320x128xbf16>
    %cst_6 = arith.constant dense<0.000000e+00> : vector<320x256xf32>
    %23 = tpu.matmul %15, %0, %cst_6 {dimension_numbers = #tpu.dot_dimension_numbers<[1], [0], [0], [1], [0, 0, 1, 1], [], []>} : vector<320x128xbf16>, vector<128x256xbf16>, vector<320x256xf32> -> vector<320x256xf32>
    %cst_7 = arith.constant dense<0.000000e+00> : vector<320x256xf32>
    %24 = tpu.matmul %22, %0, %cst_7 {dimension_numbers = #tpu.dot_dimension_numbers<[1], [0], [0], [1], [0, 0, 1, 1], [], []>} : vector<320x128xbf16>, vector<128x256xbf16>, vector<320x256xf32> -> vector<320x256xf32>
    %25 = vector.extract_strided_slice %23 {offsets = [0, 0], sizes = [320, 128], strides = [1, 1]} : vector<320x256xf32> to vector<320x128xf32>
    %26 = vector.extract_strided_slice %24 {offsets = [0, 128], sizes = [320, 128], strides = [1, 1]} : vector<320x256xf32> to vector<320x128xf32>
    %27 = arith.subf %25, %26 : vector<320x128xf32>
    %cst_8 = arith.constant 7.812500e-03 : f32
    %28 = vector.broadcast %cst_8 : f32 to vector<320x128xf32>
    %29 = arith.mulf %27, %28 : vector<320x128xf32>
    %c0_9 = arith.constant 0 : index
    %c0_10 = arith.constant 0 : index
    %30 = vector.load %arg4[%c0_9, %c0_10] : memref<320x128xf32, #tpu.memory_space<vmem>>, vector<320x128xf32>
    tpu.vector_store %arg4[%c0_9, %c0_10], %29 {strides = array<i32>} : memref<320x128xf32, #tpu.memory_space<vmem>>, vector<320x128xf32>,
    %31 = vector.extract_strided_slice %23 {offsets = [0, 128], sizes = [320, 128], strides = [1, 1]} : vector<320x256xf32> to vector<320x128xf32>
    %32 = vector.extract_strided_slice %24 {offsets = [0, 0], sizes = [320, 128], strides = [1, 1]} : vector<320x256xf32> to vector<320x128xf32>
    %33 = arith.addf %31, %32 : vector<320x128xf32>
    %cst_11 = arith.constant 7.812500e-03 : f32
    %34 = vector.broadcast %cst_11 : f32 to vector<320x128xf32>
    %35 = arith.mulf %33, %34 : vector<320x128xf32>
    %c0_12 = arith.constant 0 : index
    %c0_13 = arith.constant 0 : index
    %36 = vector.load %arg5[%c0_12, %c0_13] : memref<320x128xf32, #tpu.memory_space<vmem>>, vector<320x128xf32>
    tpu.vector_store %arg5[%c0_12, %c0_13], %35 {strides = array<i32>} : memref<320x128xf32, #tpu.memory_space<vmem>>, vector<320x128xf32>,
    return
  }
  func.func @transform_0(%arg0: i32) -> (i32, i32) {
    %c0_i32 = arith.constant 0 : i32
    %c0_i32_0 = arith.constant 0 : i32
    %c0_i32_1 = arith.constant 0 : i32
    return %c0_i32, %c0_i32_0 : i32, i32
  }
  func.func @transform_1(%arg0: i32) -> (i32, i32) {
    %c0_i32 = arith.constant 0 : i32
    %c0_i32_0 = arith.constant 0 : i32
    %c0_i32_1 = arith.constant 0 : i32
    return %c0_i32, %c0_i32_0 : i32, i32
  }
  func.func @transform_2(%arg0: i32) -> (i32, i32) {
    %c0_i32 = arith.constant 0 : i32
    %c0_i32_0 = arith.constant 0 : i32
    %c0_i32_1 = arith.constant 0 : i32
    return %c0_i32, %c0_i32_0 : i32, i32
  }
  func.func @transform_3(%arg0: i32) -> (i32, i32) {
    %c0_i32 = arith.constant 0 : i32
    %c0_i32_0 = arith.constant 0 : i32
    %c0_i32_1 = arith.constant 0 : i32
    return %c0_i32, %c0_i32_0 : i32, i32
  }
  func.func @transform_4(%arg0: i32) -> (i32, i32) {
    %c0_i32 = arith.constant 0 : i32
    %c0_i32_0 = arith.constant 0 : i32
    %c0_i32_1 = arith.constant 0 : i32
    return %c0_i32, %c0_i32_0 : i32, i32
  }
}

</mosaic_0001>

<llo_original>
// kernel: tpu_custom_call.1
$region0: #{tpu_custom_call.1}
  #allocation0 [shape = 'u32[]', space=smem, size = 0x4, offset = 0x4, fixed_abs, tag = 'smem constant byte address 0x4 - core index']
  #allocation1 [shape = 'u32[144,128]{1,0:T(1,128)}', space=vmem, size = 0x12000, scoped, tag = 'internal scratch']
  %s0 = inlined_call_operand.hbm [shape: f32[4,128], index: 0, kind: input, shape index: {}]
  %s1 = inlined_call_operand.hbm [shape: bf16[128,256], index: 1, kind: input, shape index: {}]
  %s2 = inlined_call_operand.hbm [shape: f32[80,128], index: 2, kind: input, shape index: {}]
  %s3 = inlined_call_operand.hbm [shape: f32[320,128], index: 3, kind: output, shape index: {0}]
  %s4 = inlined_call_operand.hbm [shape: f32[320,128], index: 4, kind: output, shape index: {1}]
  %5 = xla_tuple %s3, %s4
  %s6 = sld [smem:[#allocation0]]
  $region42: #{tpu_custom_call.1} parent=0
    _
  %s8 = ssub.s32 1, %s6
  %s9 = scalar_select 0, %s8, %s6
  $region1: #{tpu_custom_call.1} parent=0
    #allocation2 [shape = 'u8[2048]{0}', space=vmem, size = 0x800, scoped, tag = 'input window, operand 0, single buffered']
    #allocation3 [shape = 's32[1]{0}', space=sflag, size = 0x4, scoped, tag = 'scoped memory for tpu_custom_call.1']
    #allocation4 [shape = 's32[1]{0}', space=sflag, size = 0x4, scoped, tag = 'scoped memory for tpu_custom_call.1']
    #allocation5 [shape = 'u8[65536]{0}', space=vmem, size = 0x10000, scoped, tag = 'input window, operand 1, single buffered']
    #allocation6 [shape = 's32[1]{0}', space=sflag, size = 0x4, scoped, tag = 'scoped memory for tpu_custom_call.1']
    #allocation7 [shape = 'u8[40960]{0}', space=vmem, size = 0xa000, scoped, tag = 'input window, operand 2, single buffered']
    #allocation8 [shape = 'u8[163840]{0}', space=vmem, size = 0x28000, scoped, tag = 'output window, operand 0, single buffered']
    #allocation9 [shape = 'u8[163840]{0}', space=vmem, size = 0x28000, scoped, tag = 'output window, operand 1, single buffered']
    #allocation10 [shape = 's32[1]{0}', space=sflag, size = 0x4, scoped, tag = 'scoped memory for tpu_custom_call.1']
    %10 = vsyncpa [#allocation3], 0
    %11 = vsyncpa [#allocation6], 0
    %12 = vsyncpa [#allocation4], 0
    %13 = vsyncpa [#allocation10], 0
    // Predicated region
    $region2: #{tpu_custom_call.1} parent=1 // pred_check
      _
    $region3: #{tpu_custom_call.1} parent=1 // pred_check_branch
      %15 = sbr.rel (0) target = $region5
    $region4: #{tpu_custom_call.1} parent=1 // pred_region
      %s17 = ssub.s32 64, 64
      %18 = vsyncadd [#allocation3], %s17
      %s20 = sshll.u32 [#allocation2], 4
      %s21 = int_to_ptr.vmem [resolvable:$true] %s20
      %23 = dma.hbm_to_vmem [thread:$0]  %s0, 64, %s21, [#allocation3]
    $region5: #{tpu_custom_call.1} parent=1 // pred_fallthru
      _
    // Predicated region
    $region6: #{tpu_custom_call.1} parent=1 // pred_check
      _
    $region7: #{tpu_custom_call.1} parent=1 // pred_check_branch
      %25 = sbr.rel (0) target = $region9
    $region8: #{tpu_custom_call.1} parent=1 // pred_region
      %s27 = ssub.s32 2048, 2048
      %28 = vsyncadd [#allocation6], %s27
      %s29 = sshll.u32 [#allocation5], 4
      %s30 = int_to_ptr.vmem [resolvable:$true] %s29
      %35 = dma.hbm_to_vmem [thread:$0]  %s1, 2048, %s30, [#allocation6], 128, 128, 8
    $region9: #{tpu_custom_call.1} parent=1 // pred_fallthru
      _
    // Predicated region
    $region10: #{tpu_custom_call.1} parent=1 // pred_check
      _
    $region11: #{tpu_custom_call.1} parent=1 // pred_check_branch
      %37 = sbr.rel (0) target = $region13
    $region12: #{tpu_custom_call.1} parent=1 // pred_region
      %s39 = ssub.s32 1280, 1280
      %40 = vsyncadd [#allocation6], %s39
      %s41 = sshll.u32 [#allocation7], 4
      %s42 = int_to_ptr.vmem [resolvable:$true] %s41
      %47 = dma.hbm_to_vmem [thread:$0]  %s2, 1280, %s42, [#allocation6], 128, 128, 8
    $region13: #{tpu_custom_call.1} parent=1 // pred_fallthru
      _
    // Predicated region
    $region14: #{tpu_custom_call.1} parent=1 // pred_check
      _
    $region15: #{tpu_custom_call.1} parent=1 // pred_check_branch
      %49 = sbr.rel (0) target = $region17
    $region16: #{tpu_custom_call.1} parent=1 // pred_region
      %50 = dma.done [#allocation3], 64
    $region17: #{tpu_custom_call.1} parent=1 // pred_fallthru
      _
    // Predicated region
    $region18: #{tpu_custom_call.1} parent=1 // pred_check
      _
    $region19: #{tpu_custom_call.1} parent=1 // pred_check_branch
      %52 = sbr.rel (0) target = $region21
    $region20: #{tpu_custom_call.1} parent=1 // pred_region
      %53 = dma.done [#allocation6], 2048
    $region21: #{tpu_custom_call.1} parent=1 // pred_fallthru
      _
    // Predicated region
    $region22: #{tpu_custom_call.1} parent=1 // pred_check
      _
    $region23: #{tpu_custom_call.1} parent=1 // pred_check_branch
      %55 = sbr.rel (0) target = $region25
    $region24: #{tpu_custom_call.1} parent=1 // pred_region
      %56 = dma.done [#allocation6], 1280
    $region25: #{tpu_custom_call.1} parent=1 // pred_fallthru
      _
    %v58 = vld [vmem:[#allocation5] sm:$0xff]
    %v59 = vld [vmem:[#allocation5 + $0x8] sm:$0xff]
    %v60 = vld [vmem:[#allocation5 + $0x10] sm:$0xff]
    %v61 = vld [vmem:[#allocation5 + $0x18] sm:$0xff]
    %v62 = vld [vmem:[#allocation5 + $0x20] sm:$0xff]
    %v63 = vld [vmem:[#allocation5 + $0x28] sm:$0xff]
    %v64 = vld [vmem:[#allocation5 + $0x30] sm:$0xff]
    %v65 = vld [vmem:[#allocation5 + $0x38] sm:$0xff]
    %v66 = vld [vmem:[#allocation5 + $0x40] sm:$0xff]
    %v67 = vld [vmem:[#allocation5 + $0x48] sm:$0xff]
    %v68 = vld [vmem:[#allocation5 + $0x50] sm:$0xff]
    %v69 = vld [vmem:[#allocation5 + $0x58] sm:$0xff]
    %v70 = vld [vmem:[#allocation5 + $0x60] sm:$0xff]
    %v71 = vld [vmem:[#allocation5 + $0x68] sm:$0xff]
    %v72 = vld [vmem:[#allocation5 + $0x70] sm:$0xff]
    %v73 = vld [vmem:[#allocation5 + $0x78] sm:$0xff]
    %v74 = vld [vmem:[#allocation2] sm:$0xf]
    %v75 = vpack.c.bf16 %v74, %v74
    %v92 = vunpack.c.l.b16 %v58
    %v93 = vunpack.c.h.b16 %v58
    %v94 = vunpack.c.l.b16 %v59
    %v95 = vunpack.c.h.b16 %v59
    %v96 = vunpack.c.l.b16 %v60
    %v97 = vunpack.c.h.b16 %v60
    %v98 = vunpack.c.l.b16 %v61
    %v99 = vunpack.c.h.b16 %v61
    %v100 = vunpack.c.l.b16 %v62
    %v101 = vunpack.c.h.b16 %v62
    %v102 = vunpack.c.l.b16 %v63
    %v103 = vunpack.c.h.b16 %v63
    %v104 = vunpack.c.l.b16 %v64
    %v105 = vunpack.c.h.b16 %v64
    %v106 = vunpack.c.l.b16 %v65
    %v107 = vunpack.c.h.b16 %v65
    %v108 = vunpack.c.l.b16 %v66
    %v109 = vunpack.c.h.b16 %v66
    %v110 = vunpack.c.l.b16 %v67
    %v111 = vunpack.c.h.b16 %v67
    %v112 = vunpack.c.l.b16 %v68
    %v113 = vunpack.c.h.b16 %v68
    %v114 = vunpack.c.l.b16 %v69
    %v115 = vunpack.c.h.b16 %v69
    %v116 = vunpack.c.l.b16 %v70
    %v117 = vunpack.c.h.b16 %v70
    %v118 = vunpack.c.l.b16 %v71
    %v119 = vunpack.c.h.b16 %v71
    %v120 = vunpack.c.l.b16 %v72
    %v121 = vunpack.c.h.b16 %v72
    %v122 = vunpack.c.l.b16 %v73
    %v123 = vunpack.c.h.b16 %v73
    %v124 = vpack.c.b16 %v94, %v92
    %v125 = vpack.c.b16 %v95, %v93
    %v126 = vpack.c.b16 %v98, %v96
    %v127 = vpack.c.b16 %v99, %v97
    %v128 = vpack.c.b16 %v102, %v100
    %v129 = vpack.c.b16 %v103, %v101
    %v130 = vpack.c.b16 %v106, %v104
    %v131 = vpack.c.b16 %v107, %v105
    %v132 = vpack.c.b16 %v110, %v108
    %v133 = vpack.c.b16 %v111, %v109
    %v134 = vpack.c.b16 %v114, %v112
    %v135 = vpack.c.b16 %v115, %v113
    %v136 = vpack.c.b16 %v118, %v116
    %v137 = vpack.c.b16 %v119, %v117
    %v138 = vpack.c.b16 %v122, %v120
    %v139 = vpack.c.b16 %v123, %v121
    %156 = vmatprep.subr.bf16.mxu0 %v125
    %157 = vmatpush1.bf16.msra.mxu0 %v124
    %158 = vmatprep.subr.bf16.mxu0 %v127
    %159 = vmatpush1.bf16.msra.mxu0 %v126
    %160 = vmatprep.subr.bf16.mxu0 %v129
    %161 = vmatpush1.bf16.msra.mxu0 %v128
    %162 = vmatprep.subr.bf16.mxu0 %v131
    %163 = vmatpush1.bf16.msra.mxu0 %v130
    %164 = vmatprep.subr.bf16.mxu0 %v133
    %165 = vmatpush1.bf16.msra.mxu0 %v132
    %166 = vmatprep.subr.bf16.mxu0 %v135
    %167 = vmatpush1.bf16.msra.mxu0 %v134
    %168 = vmatprep.subr.bf16.mxu0 %v137
    %169 = vmatpush1.bf16.msra.mxu0 %v136
    %170 = vmatprep.subr.bf16.mxu0 %v139
    %171 = vmatpush1.bf16.msra.mxu0 %v138
    %172 = vmatprep.subr.bf16.mxu0 0
    %173 = vmatpush1.bf16.msra.mxu0 0
    %174 = vmatprep.subr.bf16.mxu0 0
    %175 = vmatpush1.bf16.msra.mxu0 0
    %176 = vmatprep.subr.bf16.mxu0 0
    %177 = vmatpush1.bf16.msra.mxu0 0
    %178 = vmatprep.subr.bf16.mxu0 0
    %179 = vmatpush1.bf16.msra.mxu0 0
    %180 = vmatprep.subr.bf16.mxu0 0
    %181 = vmatpush1.bf16.msra.mxu0 0
    %182 = vmatprep.subr.bf16.mxu0 0
    %183 = vmatpush1.bf16.msra.mxu0 0
    %184 = vmatprep.subr.bf16.mxu0 0
    %185 = vmatpush1.bf16.msra.mxu0 0
    %186 = vmatprep.subr.bf16.mxu0 0
    %187 = vmatpush1.bf16.msra.mxu0 0
    %188 = vmatprep.mubr.bf16.mxu0 0
    %189 = vmatmul.mubr.bf16.gmra.mrb[0].mxu0 %v75
    %v190 = vpop.f32.mrb[0].mxu0
    %v191 = vadd.f32 0.0, %v190
    %v192 = vpop.f32.mrb[0].mxu0
    %v193 = vadd.f32 0.0, %v192
    %v194 = vpop.f32.mrb[0].mxu0
    %v195 = vpop.f32.mrb[0].mxu0
    %196 = vdwg.mxu0
    %v197 = vsub.f32 0.0, %v193
    %v198 = vld [vmem:[#allocation7] sm:$0xff]
    %v199 = vld [vmem:[#allocation7 + $0x8] sm:$0xff]
    %v200 = vld [vmem:[#allocation7 + $0x10] sm:$0xff]
    %v201 = vld [vmem:[#allocation7 + $0x18] sm:$0xff]
    %v202 = vld [vmem:[#allocation7 + $0x20] sm:$0xff]
    %v203 = vld [vmem:[#allocation7 + $0x28] sm:$0xff]
    %v204 = vld [vmem:[#allocation7 + $0x30] sm:$0xff]
    %v205 = vld [vmem:[#allocation7 + $0x38] sm:$0xff]
    %v206 = vld [vmem:[#allocation7 + $0x40] sm:$0xff]
    %v207 = vld [vmem:[#allocation7 + $0x48] sm:$0xff]
    %v210 = vunpack.c.l.s4 1966171168
    %v211 = vunpack.c.0.s8 %v210
    %v212 = vlaneseq
    %v213 = vshrl.u32 %v212, 7
    %v214 = vsub.s32 %v211, %v213
    %v215 = vrot.slane %v191, %v214
    %v216 = vcombine.high %v215, %v215
    %v218 = vunpack.c.l.s4 1966171168
    %v219 = vunpack.c.0.s8 %v218
    %v220 = vlaneseq
    %v221 = vshrl.u32 %v220, 7
    %v222 = vsub.s32 %v219, %v221
    %v223 = vrot.slane %v215, %v222
    %v225 = vunpack.c.l.s4 1966171168
    %v226 = vunpack.c.0.s8 %v225
    %v227 = vlaneseq
    %v228 = vshrl.u32 %v227, 7
    %v229 = vsub.s32 %v226, %v228
    %v230 = vrot.slane %v216, %v229
    %v231 = vcombine.high %v223, %v223
    %v232 = vcombine.high %v230, %v230
    %v233 = vlaneseq
    %v234 = vshrl.u32 %v233, 7
    %v235 = vsub.s32 0, %v234
    %v236 = vrot.slane %v223, %v235
    %v237 = vlaneseq
    %v238 = vshrl.u32 %v237, 7
    %v239 = vsub.s32 0, %v238
    %v240 = vrot.slane %v230, %v239
    %v241 = vlaneseq
    %v242 = vshrl.u32 %v241, 7
    %v243 = vsub.s32 0, %v242
    %v244 = vrot.slane %v231, %v243
    %v245 = vlaneseq
    %v246 = vshrl.u32 %v245, 7
    %v247 = vsub.s32 0, %v246
    %v248 = vrot.slane %v232, %v247
    %v253 = vmul.f32 %v236, %v198
    %v254 = vmul.f32 %v236, %v199
    %v255 = vmul.f32 %v236, %v200
    %v256 = vmul.f32 %v236, %v201
    %v257 = vmul.f32 %v236, %v202
    %v258 = vmul.f32 %v236, %v203
    %v259 = vmul.f32 %v236, %v204
    %v260 = vmul.f32 %v236, %v205
    %v261 = vmul.f32 %v236, %v206
    %v262 = vmul.f32 %v236, %v207
    %v263 = vmul.f32 %v240, %v198
    %v264 = vmul.f32 %v240, %v199
    %v265 = vmul.f32 %v240, %v200
    %v266 = vmul.f32 %v240, %v201
    %v267 = vmul.f32 %v240, %v202
    %v268 = vmul.f32 %v240, %v203
    %v269 = vmul.f32 %v240, %v204
    %v270 = vmul.f32 %v240, %v205
    %v271 = vmul.f32 %v240, %v206
    %v272 = vmul.f32 %v240, %v207
    %v273 = vmul.f32 %v244, %v198
    %v274 = vmul.f32 %v244, %v199
    %v275 = vmul.f32 %v244, %v200
    %v276 = vmul.f32 %v244, %v201
    %v277 = vmul.f32 %v244, %v202
    %v278 = vmul.f32 %v244, %v203
    %v279 = vmul.f32 %v244, %v204
    %v280 = vmul.f32 %v244, %v205
    %v281 = vmul.f32 %v244, %v206
    %v282 = vmul.f32 %v244, %v207
    %v283 = vmul.f32 %v248, %v198
    %v284 = vmul.f32 %v248, %v199
    %v285 = vmul.f32 %v248, %v200
    %v286 = vmul.f32 %v248, %v201
    %v287 = vmul.f32 %v248, %v202
    %v288 = vmul.f32 %v248, %v203
    %v289 = vmul.f32 %v248, %v204
    %v290 = vmul.f32 %v248, %v205
    %v291 = vmul.f32 %v248, %v206
    %v292 = vmul.f32 %v248, %v207
    %v293 = vpack.c.bf16 %v254, %v253
    %v294 = vpack.c.bf16 %v256, %v255
    %v295 = vpack.c.bf16 %v258, %v257
    %v296 = vpack.c.bf16 %v260, %v259
    %v297 = vpack.c.bf16 %v262, %v261
    %v298 = vpack.c.bf16 %v264, %v263
    %v299 = vpack.c.bf16 %v266, %v265
    %v300 = vpack.c.bf16 %v268, %v267
    %v301 = vpack.c.bf16 %v270, %v269
    %v302 = vpack.c.bf16 %v272, %v271
    %v303 = vpack.c.bf16 %v274, %v273
    %v304 = vpack.c.bf16 %v276, %v275
    %v305 = vpack.c.bf16 %v278, %v277
    %v306 = vpack.c.bf16 %v280, %v279
    %v307 = vpack.c.bf16 %v282, %v281
    %v308 = vpack.c.bf16 %v284, %v283
    %v309 = vpack.c.bf16 %v286, %v285
    %v310 = vpack.c.bf16 %v288, %v287
    %v311 = vpack.c.bf16 %v290, %v289
    %v312 = vpack.c.bf16 %v292, %v291
    %v315 = vunpack.c.l.s4 1966171168
    %v316 = vunpack.c.0.s8 %v315
    %v317 = vlaneseq
    %v318 = vshrl.u32 %v317, 7
    %v319 = vsub.s32 %v316, %v318
    %v320 = vrot.slane %v197, %v319
    %v321 = vcombine.high %v320, %v320
    %v323 = vunpack.c.l.s4 1966171168
    %v324 = vunpack.c.0.s8 %v323
    %v325 = vlaneseq
    %v326 = vshrl.u32 %v325, 7
    %v327 = vsub.s32 %v324, %v326
    %v328 = vrot.slane %v320, %v327
    %v330 = vunpack.c.l.s4 1966171168
    %v331 = vunpack.c.0.s8 %v330
    %v332 = vlaneseq
    %v333 = vshrl.u32 %v332, 7
    %v334 = vsub.s32 %v331, %v333
    %v335 = vrot.slane %v321, %v334
    %v336 = vcombine.high %v328, %v328
    %v337 = vcombine.high %v335, %v335
    %v338 = vlaneseq
    %v339 = vshrl.u32 %v338, 7
    %v340 = vsub.s32 0, %v339
    %v341 = vrot.slane %v328, %v340
    %v342 = vlaneseq
    %v343 = vshrl.u32 %v342, 7
    %v344 = vsub.s32 0, %v343
    %v345 = vrot.slane %v335, %v344
    %v346 = vlaneseq
    %v347 = vshrl.u32 %v346, 7
    %v348 = vsub.s32 0, %v347
    %v349 = vrot.slane %v336, %v348
    %v350 = vlaneseq
    %v351 = vshrl.u32 %v350, 7
    %v352 = vsub.s32 0, %v351
    %v353 = vrot.slane %v337, %v352
    %v358 = vmul.f32 %v341, %v198
    %v359 = vmul.f32 %v341, %v199
    %v360 = vmul.f32 %v341, %v200
    %v361 = vmul.f32 %v341, %v201
    %v362 = vmul.f32 %v341, %v202
    %v363 = vmul.f32 %v341, %v203
    %v364 = vmul.f32 %v341, %v204
    %v365 = vmul.f32 %v341, %v205
    %v366 = vmul.f32 %v341, %v206
    %v367 = vmul.f32 %v341, %v207
    %v368 = vmul.f32 %v345, %v198
    %v369 = vmul.f32 %v345, %v199
    %v370 = vmul.f32 %v345, %v200
    %v371 = vmul.f32 %v345, %v201
    %v372 = vmul.f32 %v345, %v202
    %v373 = vmul.f32 %v345, %v203
    %v374 = vmul.f32 %v345, %v204
    %v375 = vmul.f32 %v345, %v205
    %v376 = vmul.f32 %v345, %v206
    %v377 = vmul.f32 %v345, %v207
    %v378 = vmul.f32 %v349, %v198
    %v379 = vmul.f32 %v349, %v199
    %v380 = vmul.f32 %v349, %v200
    %v381 = vmul.f32 %v349, %v201
    %v382 = vmul.f32 %v349, %v202
    %v383 = vmul.f32 %v349, %v203
    %v384 = vmul.f32 %v349, %v204
    %v385 = vmul.f32 %v349, %v205
    %v386 = vmul.f32 %v349, %v206
    %v387 = vmul.f32 %v349, %v207
    %v388 = vmul.f32 %v353, %v198
    %v389 = vmul.f32 %v353, %v199
    %v390 = vmul.f32 %v353, %v200
    %v391 = vmul.f32 %v353, %v201
    %v392 = vmul.f32 %v353, %v202
    %v393 = vmul.f32 %v353, %v203
    %v394 = vmul.f32 %v353, %v204
    %v395 = vmul.f32 %v353, %v205
    %v396 = vmul.f32 %v353, %v206
    %v397 = vmul.f32 %v353, %v207
    %v398 = vpack.c.bf16 %v359, %v358
    %v399 = vpack.c.bf16 %v361, %v360
    %v400 = vpack.c.bf16 %v363, %v362
    %v401 = vpack.c.bf16 %v365, %v364
    %v402 = vpack.c.bf16 %v367, %v366
    %v403 = vpack.c.bf16 %v369, %v368
    %v404 = vpack.c.bf16 %v371, %v370
    %v405 = vpack.c.bf16 %v373, %v372
    %v406 = vpack.c.bf16 %v375, %v374
    %v407 = vpack.c.bf16 %v377, %v376
    %v408 = vpack.c.bf16 %v379, %v378
    %v409 = vpack.c.bf16 %v381, %v380
    %v410 = vpack.c.bf16 %v383, %v382
    %v411 = vpack.c.bf16 %v385, %v384
    %v412 = vpack.c.bf16 %v387, %v386
    %v413 = vpack.c.bf16 %v389, %v388
    %v414 = vpack.c.bf16 %v391, %v390
    %v415 = vpack.c.bf16 %v393, %v392
    %v416 = vpack.c.bf16 %v395, %v394
    %v417 = vpack.c.bf16 %v397, %v396
    %418 = vmatprep.subr.bf16.mxu0 %v125
    %419 = vmatpush1.bf16.msra.mxu0 %v124
    %420 = vmatprep.subr.bf16.mxu0 %v127
    %421 = vmatpush1.bf16.msra.mxu0 %v126
    %422 = vmatprep.subr.bf16.mxu0 %v129
    %423 = vmatpush1.bf16.msra.mxu0 %v128
    %424 = vmatprep.subr.bf16.mxu0 %v131
    %425 = vmatpush1.bf16.msra.mxu0 %v130
    %426 = vmatprep.subr.bf16.mxu0 %v133
    %427 = vmatpush1.bf16.msra.mxu0 %v132
    %428 = vmatprep.subr.bf16.mxu0 %v135
    %429 = vmatpush1.bf16.msra.mxu0 %v134
    %430 = vmatprep.subr.bf16.mxu0 %v137
    %431 = vmatpush1.bf16.msra.mxu0 %v136
    %432 = vmatprep.subr.bf16.mxu0 %v139
    %433 = vmatpush1.bf16.msra.mxu0 %v138
    %434 = vmatprep.subr.bf16.mxu0 0
    %435 = vmatpush1.bf16.msra.mxu0 0
    %436 = vmatprep.subr.bf16.mxu0 0
    %437 = vmatpush1.bf16.msra.mxu0 0
    %438 = vmatprep.subr.bf16.mxu0 0
    %439 = vmatpush1.bf16.msra.mxu0 0
    %440 = vmatprep.subr.bf16.mxu0 0
    %441 = vmatpush1.bf16.msra.mxu0 0
    %442 = vmatprep.subr.bf16.mxu0 0
    %443 = vmatpush1.bf16.msra.mxu0 0
    %444 = vmatprep.subr.bf16.mxu0 0
    %445 = vmatpush1.bf16.msra.mxu0 0
    %446 = vmatprep.subr.bf16.mxu0 0
    %447 = vmatpush1.bf16.msra.mxu0 0
    %448 = vmatprep.subr.bf16.mxu0 0
    %449 = vmatpush1.bf16.msra.mxu0 0
    %450 = vmatprep.mubr.bf16.mxu0 0
    %451 = vmatmul.mubr.bf16.gmra.mrb[0].mxu0 %v293
    %v452 = vpop.f32.mrb[0].mxu0
    %v453 = vadd.f32 0.0, %v452
    %v454 = vpop.f32.mrb[0].mxu0
    %v455 = vadd.f32 0.0, %v454
    %v456 = vpop.f32.mrb[0].mxu0
    %v457 = vadd.f32 0.0, %v456
    %v458 = vpop.f32.mrb[0].mxu0
    %v459 = vadd.f32 0.0, %v458
    %460 = vmatprep.mubr.bf16.mxu0 0
    %461 = vmatmul.mubr.bf16.gmra.mrb[0].mxu0 %v294
    %v462 = vpop.f32.mrb[0].mxu0
    %v463 = vadd.f32 0.0, %v462
    %v464 = vpop.f32.mrb[0].mxu0
    %v465 = vadd.f32 0.0, %v464
    %v466 = vpop.f32.mrb[0].mxu0
    %v467 = vadd.f32 0.0, %v466
    %v468 = vpop.f32.mrb[0].mxu0
    %v469 = vadd.f32 0.0, %v468
    %470 = vmatprep.mubr.bf16.mxu0 0
    %471 = vmatmul.mubr.bf16.gmra.mrb[0].mxu0 %v295
    %v472 = vpop.f32.mrb[0].mxu0
    %v473 = vadd.f32 0.0, %v472
    %v474 = vpop.f32.mrb[0].mxu0
    %v475 = vadd.f32 0.0, %v474
    %v476 = vpop.f32.mrb[0].mxu0
    %v477 = vadd.f32 0.0, %v476
    %v478 = vpop.f32.mrb[0].mxu0
    %v479 = vadd.f32 0.0, %v478
    %480 = vmatprep.mubr.bf16.mxu0 0
    %481 = vmatmul.mubr.bf16.gmra.mrb[0].mxu0 %v296
    %v482 = vpop.f32.mrb[0].mxu0
    %v483 = vadd.f32 0.0, %v482
    %v484 = vpop.f32.mrb[0].mxu0
    %v485 = vadd.f32 0.0, %v484
    %v486 = vpop.f32.mrb[0].mxu0
    %v487 = vadd.f32 0.0, %v486
    %v488 = vpop.f32.mrb[0].mxu0
    %v489 = vadd.f32 0.0, %v488
    %490 = vmatprep.mubr.bf16.mxu0 0
    %491 = vmatmul.mubr.bf16.gmra.mrb[0].mxu0 %v297
    %v492 = vpop.f32.mrb[0].mxu0
    %v493 = vadd.f32 0.0, %v492
    %v494 = vpop.f32.mrb[0].mxu0
    %v495 = vadd.f32 0.0, %v494
    %v496 = vpop.f32.mrb[0].mxu0
    %v497 = vadd.f32 0.0, %v496
    %v498 = vpop.f32.mrb[0].mxu0
    %v499 = vadd.f32 0.0, %v498
    %500 = vmatprep.mubr.bf16.mxu0 0
    %501 = vmatmul.mubr.bf16.gmra.mrb[0].mxu0 %v298
    %v502 = vpop.f32.mrb[0].mxu0
    %v503 = vadd.f32 0.0, %v502
    %v504 = vpop.f32.mrb[0].mxu0
    %v505 = vadd.f32 0.0, %v504
    %v506 = vpop.f32.mrb[0].mxu0
    %v507 = vadd.f32 0.0, %v506
    %v508 = vpop.f32.mrb[0].mxu0
    %v509 = vadd.f32 0.0, %v508
    %510 = vmatprep.mubr.bf16.mxu0 0
    %511 = vmatmul.mubr.bf16.gmra.mrb[0].mxu0 %v299
    %v512 = vpop.f32.mrb[0].mxu0
    %v513 = vadd.f32 0.0, %v512
    %v514 = vpop.f32.mrb[0].mxu0
    %v515 = vadd.f32 0.0, %v514
    %v516 = vpop.f32.mrb[0].mxu0
    %v517 = vadd.f32 0.0, %v516
    %v518 = vpop.f32.mrb[0].mxu0
    %v519 = vadd.f32 0.0, %v518
    %520 = vmatprep.mubr.bf16.mxu0 0
    %521 = vmatmul.mubr.bf16.gmra.mrb[0].mxu0 %v300
    %v522 = vpop.f32.mrb[0].mxu0
    %v523 = vadd.f32 0.0, %v522
    %v524 = vpop.f32.mrb[0].mxu0
    %v525 = vadd.f32 0.0, %v524
    %v526 = vpop.f32.mrb[0].mxu0
    %v527 = vadd.f32 0.0, %v526
    %v528 = vpop.f32.mrb[0].mxu0
    %v529 = vadd.f32 0.0, %v528
    %530 = vmatprep.mubr.bf16.mxu0 0
    %531 = vmatmul.mubr.bf16.gmra.mrb[0].mxu0 %v301
    %v532 = vpop.f32.mrb[0].mxu0
    %v533 = vadd.f32 0.0, %v532
    %v534 = vpop.f32.mrb[0].mxu0
    %v535 = vadd.f32 0.0, %v534
    %v536 = vpop.f32.mrb[0].mxu0
    %v537 = vadd.f32 0.0, %v536
    %v538 = vpop.f32.mrb[0].mxu0
    %v539 = vadd.f32 0.0, %v538
    %540 = vmatprep.mubr.bf16.mxu0 0
    %541 = vmatmul.mubr.bf16.gmra.mrb[0].mxu0 %v302
    %v542 = vpop.f32.mrb[0].mxu0
    %v543 = vadd.f32 0.0, %v542
    %v544 = vpop.f32.mrb[0].mxu0
    %v545 = vadd.f32 0.0, %v544
    %v546 = vpop.f32.mrb[0].mxu0
    %v547 = vadd.f32 0.0, %v546
    %v548 = vpop.f32.mrb[0].mxu0
    %v549 = vadd.f32 0.0, %v548
    %550 = vmatprep.mubr.bf16.mxu0 0
    %551 = vmatmul.mubr.bf16.gmra.mrb[0].mxu0 %v303
    %v552 = vpop.f32.mrb[0].mxu0
    %v553 = vadd.f32 0.0, %v552
    %v554 = vpop.f32.mrb[0].mxu0
    %v555 = vadd.f32 0.0, %v554
    %v556 = vpop.f32.mrb[0].mxu0
    %v557 = vadd.f32 0.0, %v556
    %v558 = vpop.f32.mrb[0].mxu0
    %v559 = vadd.f32 0.0, %v558
    %560 = vmatprep.mubr.bf16.mxu0 0
    %561 = vmatmul.mubr.bf16.gmra.mrb[0].mxu0 %v304
    %v562 = vpop.f32.mrb[0].mxu0
    %v563 = vadd.f32 0.0, %v562
    %v564 = vpop.f32.mrb[0].mxu0
    %v565 = vadd.f32 0.0, %v564
    %v566 = vpop.f32.mrb[0].mxu0
    %v567 = vadd.f32 0.0, %v566
    %v568 = vpop.f32.mrb[0].mxu0
    %v569 = vadd.f32 0.0, %v568
    %570 = vmatprep.mubr.bf16.mxu0 0
    %571 = vmatmul.mubr.bf16.gmra.mrb[0].mxu0 %v305
    %v572 = vpop.f32.mrb[0].mxu0
    %v573 = vadd.f32 0.0, %v572
    %v574 = vpop.f32.mrb[0].mxu0
    %v575 = vadd.f32 0.0, %v574
    %v576 = vpop.f32.mrb[0].mxu0
    %v577 = vadd.f32 0.0, %v576
    %v578 = vpop.f32.mrb[0].mxu0
    %v579 = vadd.f32 0.0, %v578
    %580 = vmatprep.mubr.bf16.mxu0 0
    %581 = vmatmul.mubr.bf16.gmra.mrb[0].mxu0 %v306
    %v582 = vpop.f32.mrb[0].mxu0
    %v583 = vadd.f32 0.0, %v582
    %v584 = vpop.f32.mrb[0].mxu0
    %v585 = vadd.f32 0.0, %v584
    %v586 = vpop.f32.mrb[0].mxu0
    %v587 = vadd.f32 0.0, %v586
    %v588 = vpop.f32.mrb[0].mxu0
    %v589 = vadd.f32 0.0, %v588
    %590 = vmatprep.mubr.bf16.mxu0 0
    %591 = vmatmul.mubr.bf16.gmra.mrb[0].mxu0 %v307
    %v592 = vpop.f32.mrb[0].mxu0
    %v593 = vadd.f32 0.0, %v592
    %v594 = vpop.f32.mrb[0].mxu0
    %v595 = vadd.f32 0.0, %v594
    %v596 = vpop.f32.mrb[0].mxu0
    %v597 = vadd.f32 0.0, %v596
    %v598 = vpop.f32.mrb[0].mxu0
    %v599 = vadd.f32 0.0, %v598
    %600 = vmatprep.mubr.bf16.mxu0 0
    %601 = vmatmul.mubr.bf16.gmra.mrb[0].mxu0 %v308
    %v602 = vpop.f32.mrb[0].mxu0
    %v603 = vadd.f32 0.0, %v602
    %v604 = vpop.f32.mrb[0].mxu0
    %v605 = vadd.f32 0.0, %v604
    %v606 = vpop.f32.mrb[0].mxu0
    %v607 = vadd.f32 0.0, %v606
    %v608 = vpop.f32.mrb[0].mxu0
    %v609 = vadd.f32 0.0, %v608
    %610 = vmatprep.mubr.bf16.mxu0 0
    %611 = vmatmul.mubr.bf16.gmra.mrb[0].mxu0 %v309
    %v612 = vpop.f32.mrb[0].mxu0
    %v613 = vadd.f32 0.0, %v612
    %v614 = vpop.f32.mrb[0].mxu0
    %v615 = vadd.f32 0.0, %v614
    %v616 = vpop.f32.mrb[0].mxu0
    %v617 = vadd.f32 0.0, %v616
    %v618 = vpop.f32.mrb[0].mxu0
    %v619 = vadd.f32 0.0, %v618
    %620 = vmatprep.mubr.bf16.mxu0 0
    %621 = vmatmul.mubr.bf16.gmra.mrb[0].mxu0 %v310
    %v622 = vpop.f32.mrb[0].mxu0
    %v623 = vadd.f32 0.0, %v622
    %v624 = vpop.f32.mrb[0].mxu0
    %v625 = vadd.f32 0.0, %v624
    %v626 = vpop.f32.mrb[0].mxu0
    %v627 = vadd.f32 0.0, %v626
    %v628 = vpop.f32.mrb[0].mxu0
    %v629 = vadd.f32 0.0, %v628
    %630 = vmatprep.mubr.bf16.mxu0 0
    %631 = vmatmul.mubr.bf16.gmra.mrb[0].mxu0 %v311
    %v632 = vpop.f32.mrb[0].mxu0
    %v633 = vadd.f32 0.0, %v632
    %v634 = vpop.f32.mrb[0].mxu0
    %v635 = vadd.f32 0.0, %v634
    %v636 = vpop.f32.mrb[0].mxu0
    %v637 = vadd.f32 0.0, %v636
    %v638 = vpop.f32.mrb[0].mxu0
    %v639 = vadd.f32 0.0, %v638
    %640 = vmatprep.mubr.bf16.mxu0 0
    %641 = vmatmul.mubr.bf16.gmra.mrb[0].mxu0 %v312
    %v642 = vpop.f32.mrb[0].mxu0
    %v643 = vadd.f32 0.0, %v642
    %v644 = vpop.f32.mrb[0].mxu0
    %v645 = vadd.f32 0.0, %v644
    %v646 = vpop.f32.mrb[0].mxu0
    %v647 = vadd.f32 0.0, %v646
    %v648 = vpop.f32.mrb[0].mxu0
    %v649 = vadd.f32 0.0, %v648
    %650 = vdwg.mxu0
    %651 = vmatprep.subr.bf16.mxu0 %v125
    %652 = vmatpush1.bf16.msra.mxu0 %v124
    %653 = vmatprep.subr.bf16.mxu0 %v127
    %654 = vmatpush1.bf16.msra.mxu0 %v126
    %655 = vmatprep.subr.bf16.mxu0 %v129
    %656 = vmatpush1.bf16.msra.mxu0 %v128
    %657 = vmatprep.subr.bf16.mxu0 %v131
    %658 = vmatpush1.bf16.msra.mxu0 %v130
    %659 = vmatprep.subr.bf16.mxu0 %v133
    %660 = vmatpush1.bf16.msra.mxu0 %v132
    %661 = vmatprep.subr.bf16.mxu0 %v135
    %662 = vmatpush1.bf16.msra.mxu0 %v134
    %663 = vmatprep.subr.bf16.mxu0 %v137
    %664 = vmatpush1.bf16.msra.mxu0 %v136
    %665 = vmatprep.subr.bf16.mxu0 %v139
    %666 = vmatpush1.bf16.msra.mxu0 %v138
    %667 = vmatprep.subr.bf16.mxu0 0
    %668 = vmatpush1.bf16.msra.mxu0 0
    %669 = vmatprep.subr.bf16.mxu0 0
    %670 = vmatpush1.bf16.msra.mxu0 0
    %671 = vmatprep.subr.bf16.mxu0 0
    %672 = vmatpush1.bf16.msra.mxu0 0
    %673 = vmatprep.subr.bf16.mxu0 0
    %674 = vmatpush1.bf16.msra.mxu0 0
    %675 = vmatprep.subr.bf16.mxu0 0
    %676 = vmatpush1.bf16.msra.mxu0 0
    %677 = vmatprep.subr.bf16.mxu0 0
    %678 = vmatpush1.bf16.msra.mxu0 0
    %679 = vmatprep.subr.bf16.mxu0 0
    %680 = vmatpush1.bf16.msra.mxu0 0
    %681 = vmatprep.subr.bf16.mxu0 0
    %682 = vmatpush1.bf16.msra.mxu0 0
    %683 = vmatprep.mubr.bf16.mxu0 0
    %684 = vmatmul.mubr.bf16.gmra.mrb[0].mxu0 %v398
    %v685 = vpop.f32.mrb[0].mxu0
    %v686 = vadd.f32 0.0, %v685
    %v687 = vpop.f32.mrb[0].mxu0
    %v688 = vadd.f32 0.0, %v687
    %v689 = vpop.f32.mrb[0].mxu0
    %v690 = vadd.f32 0.0, %v689
    %v691 = vpop.f32.mrb[0].mxu0
    %v692 = vadd.f32 0.0, %v691
    %693 = vmatprep.mubr.bf16.mxu0 0
    %694 = vmatmul.mubr.bf16.gmra.mrb[0].mxu0 %v399
    %v695 = vpop.f32.mrb[0].mxu0
    %v696 = vadd.f32 0.0, %v695
    %v697 = vpop.f32.mrb[0].mxu0
    %v698 = vadd.f32 0.0, %v697
    %v699 = vpop.f32.mrb[0].mxu0
    %v700 = vadd.f32 0.0, %v699
    %v701 = vpop.f32.mrb[0].mxu0
    %v702 = vadd.f32 0.0, %v701
    %703 = vmatprep.mubr.bf16.mxu0 0
    %704 = vmatmul.mubr.bf16.gmra.mrb[0].mxu0 %v400
    %v705 = vpop.f32.mrb[0].mxu0
    %v706 = vadd.f32 0.0, %v705
    %v707 = vpop.f32.mrb[0].mxu0
    %v708 = vadd.f32 0.0, %v707
    %v709 = vpop.f32.mrb[0].mxu0
    %v710 = vadd.f32 0.0, %v709
    %v711 = vpop.f32.mrb[0].mxu0
    %v712 = vadd.f32 0.0, %v711
    %713 = vmatprep.mubr.bf16.mxu0 0
    %714 = vmatmul.mubr.bf16.gmra.mrb[0].mxu0 %v401
    %v715 = vpop.f32.mrb[0].mxu0
    %v716 = vadd.f32 0.0, %v715
    %v717 = vpop.f32.mrb[0].mxu0
    %v718 = vadd.f32 0.0, %v717
    %v719 = vpop.f32.mrb[0].mxu0
    %v720 = vadd.f32 0.0, %v719
    %v721 = vpop.f32.mrb[0].mxu0
    %v722 = vadd.f32 0.0, %v721
    %723 = vmatprep.mubr.bf16.mxu0 0
    %724 = vmatmul.mubr.bf16.gmra.mrb[0].mxu0 %v402
    %v725 = vpop.f32.mrb[0].mxu0
    %v726 = vadd.f32 0.0, %v725
    %v727 = vpop.f32.mrb[0].mxu0
    %v728 = vadd.f32 0.0, %v727
    %v729 = vpop.f32.mrb[0].mxu0
    %v730 = vadd.f32 0.0, %v729
    %v731 = vpop.f32.mrb[0].mxu0
    %v732 = vadd.f32 0.0, %v731
    %733 = vmatprep.mubr.bf16.mxu0 0
    %734 = vmatmul.mubr.bf16.gmra.mrb[0].mxu0 %v403
    %v735 = vpop.f32.mrb[0].mxu0
    %v736 = vadd.f32 0.0, %v735
    %v737 = vpop.f32.mrb[0].mxu0
    %v738 = vadd.f32 0.0, %v737
    %v739 = vpop.f32.mrb[0].mxu0
    %v740 = vadd.f32 0.0, %v739
    %v741 = vpop.f32.mrb[0].mxu0
    %v742 = vadd.f32 0.0, %v741
    %743 = vmatprep.mubr.bf16.mxu0 0
    %744 = vmatmul.mubr.bf16.gmra.mrb[0].mxu0 %v404
    %v745 = vpop.f32.mrb[0].mxu0
    %v746 = vadd.f32 0.0, %v745
    %v747 = vpop.f32.mrb[0].mxu0
    %v748 = vadd.f32 0.0, %v747
    %v749 = vpop.f32.mrb[0].mxu0
    %v750 = vadd.f32 0.0, %v749
    %v751 = vpop.f32.mrb[0].mxu0
    %v752 = vadd.f32 0.0, %v751
    %753 = vmatprep.mubr.bf16.mxu0 0
    %754 = vmatmul.mubr.bf16.gmra.mrb[0].mxu0 %v405
    %v755 = vpop.f32.mrb[0].mxu0
    %v756 = vadd.f32 0.0, %v755
    %v757 = vpop.f32.mrb[0].mxu0
    %v758 = vadd.f32 0.0, %v757
    %v759 = vpop.f32.mrb[0].mxu0
    %v760 = vadd.f32 0.0, %v759
    %v761 = vpop.f32.mrb[0].mxu0
    %v762 = vadd.f32 0.0, %v761
    %763 = vmatprep.mubr.bf16.mxu0 0
    %764 = vmatmul.mubr.bf16.gmra.mrb[0].mxu0 %v406
    %v765 = vpop.f32.mrb[0].mxu0
    %v766 = vadd.f32 0.0, %v765
    %v767 = vpop.f32.mrb[0].mxu0
    %v768 = vadd.f32 0.0, %v767
    %v769 = vpop.f32.mrb[0].mxu0
    %v770 = vadd.f32 0.0, %v769
    %v771 = vpop.f32.mrb[0].mxu0
    %v772 = vadd.f32 0.0, %v771
    %773 = vmatprep.mubr.bf16.mxu0 0
    %774 = vmatmul.mubr.bf16.gmra.mrb[0].mxu0 %v407
    %v775 = vpop.f32.mrb[0].mxu0
    %v776 = vadd.f32 0.0, %v775
    %v777 = vpop.f32.mrb[0].mxu0
    %v778 = vadd.f32 0.0, %v777
    %v779 = vpop.f32.mrb[0].mxu0
    %v780 = vadd.f32 0.0, %v779
    %v781 = vpop.f32.mrb[0].mxu0
    %v782 = vadd.f32 0.0, %v781
    %783 = vmatprep.mubr.bf16.mxu0 0
    %784 = vmatmul.mubr.bf16.gmra.mrb[0].mxu0 %v408
    %v785 = vpop.f32.mrb[0].mxu0
    %v786 = vadd.f32 0.0, %v785
    %v787 = vpop.f32.mrb[0].mxu0
    %v788 = vadd.f32 0.0, %v787
    %v789 = vpop.f32.mrb[0].mxu0
    %v790 = vadd.f32 0.0, %v789
    %v791 = vpop.f32.mrb[0].mxu0
    %v792 = vadd.f32 0.0, %v791
    %793 = vmatprep.mubr.bf16.mxu0 0
    %794 = vmatmul.mubr.bf16.gmra.mrb[0].mxu0 %v409
    %v795 = vpop.f32.mrb[0].mxu0
    %v796 = vadd.f32 0.0, %v795
    %v797 = vpop.f32.mrb[0].mxu0
    %v798 = vadd.f32 0.0, %v797
    %v799 = vpop.f32.mrb[0].mxu0
    %v800 = vadd.f32 0.0, %v799
    %v801 = vpop.f32.mrb[0].mxu0
    %v802 = vadd.f32 0.0, %v801
    %803 = vmatprep.mubr.bf16.mxu0 0
    %804 = vmatmul.mubr.bf16.gmra.mrb[0].mxu0 %v410
    %v805 = vpop.f32.mrb[0].mxu0
    %v806 = vadd.f32 0.0, %v805
    %v807 = vpop.f32.mrb[0].mxu0
    %v808 = vadd.f32 0.0, %v807
    %v809 = vpop.f32.mrb[0].mxu0
    %v810 = vadd.f32 0.0, %v809
    %v811 = vpop.f32.mrb[0].mxu0
    %v812 = vadd.f32 0.0, %v811
    %813 = vmatprep.mubr.bf16.mxu0 0
    %814 = vmatmul.mubr.bf16.gmra.mrb[0].mxu0 %v411
    %v815 = vpop.f32.mrb[0].mxu0
    %v816 = vadd.f32 0.0, %v815
    %v817 = vpop.f32.mrb[0].mxu0
    %v818 = vadd.f32 0.0, %v817
    %v819 = vpop.f32.mrb[0].mxu0
    %v820 = vadd.f32 0.0, %v819
    %v821 = vpop.f32.mrb[0].mxu0
    %v822 = vadd.f32 0.0, %v821
    %823 = vmatprep.mubr.bf16.mxu0 0
    %824 = vmatmul.mubr.bf16.gmra.mrb[0].mxu0 %v412
    %v825 = vpop.f32.mrb[0].mxu0
    %v826 = vadd.f32 0.0, %v825
    %v827 = vpop.f32.mrb[0].mxu0
    %v828 = vadd.f32 0.0, %v827
    %v829 = vpop.f32.mrb[0].mxu0
    %v830 = vadd.f32 0.0, %v829
    %v831 = vpop.f32.mrb[0].mxu0
    %v832 = vadd.f32 0.0, %v831
    %833 = vmatprep.mubr.bf16.mxu0 0
    %834 = vmatmul.mubr.bf16.gmra.mrb[0].mxu0 %v413
    %v835 = vpop.f32.mrb[0].mxu0
    %v836 = vadd.f32 0.0, %v835
    %v837 = vpop.f32.mrb[0].mxu0
    %v838 = vadd.f32 0.0, %v837
    %v839 = vpop.f32.mrb[0].mxu0
    %v840 = vadd.f32 0.0, %v839
    %v841 = vpop.f32.mrb[0].mxu0
    %v842 = vadd.f32 0.0, %v841
    %843 = vmatprep.mubr.bf16.mxu0 0
    %844 = vmatmul.mubr.bf16.gmra.mrb[0].mxu0 %v414
    %v845 = vpop.f32.mrb[0].mxu0
    %v846 = vadd.f32 0.0, %v845
    %v847 = vpop.f32.mrb[0].mxu0
    %v848 = vadd.f32 0.0, %v847
    %v849 = vpop.f32.mrb[0].mxu0
    %v850 = vadd.f32 0.0, %v849
    %v851 = vpop.f32.mrb[0].mxu0
    %v852 = vadd.f32 0.0, %v851
    %853 = vmatprep.mubr.bf16.mxu0 0
    %854 = vmatmul.mubr.bf16.gmra.mrb[0].mxu0 %v415
    %v855 = vpop.f32.mrb[0].mxu0
    %v856 = vadd.f32 0.0, %v855
    %v857 = vpop.f32.mrb[0].mxu0
    %v858 = vadd.f32 0.0, %v857
    %v859 = vpop.f32.mrb[0].mxu0
    %v860 = vadd.f32 0.0, %v859
    %v861 = vpop.f32.mrb[0].mxu0
    %v862 = vadd.f32 0.0, %v861
    %863 = vmatprep.mubr.bf16.mxu0 0
    %864 = vmatmul.mubr.bf16.gmra.mrb[0].mxu0 %v416
    %v865 = vpop.f32.mrb[0].mxu0
    %v866 = vadd.f32 0.0, %v865
    %v867 = vpop.f32.mrb[0].mxu0
    %v868 = vadd.f32 0.0, %v867
    %v869 = vpop.f32.mrb[0].mxu0
    %v870 = vadd.f32 0.0, %v869
    %v871 = vpop.f32.mrb[0].mxu0
    %v872 = vadd.f32 0.0, %v871
    %873 = vmatprep.mubr.bf16.mxu0 0
    %874 = vmatmul.mubr.bf16.gmra.mrb[0].mxu0 %v417
    %v875 = vpop.f32.mrb[0].mxu0
    %v876 = vadd.f32 0.0, %v875
    %v877 = vpop.f32.mrb[0].mxu0
    %v878 = vadd.f32 0.0, %v877
    %v879 = vpop.f32.mrb[0].mxu0
    %v880 = vadd.f32 0.0, %v879
    %v881 = vpop.f32.mrb[0].mxu0
    %v882 = vadd.f32 0.0, %v881
    %883 = vdwg.mxu0
    %v884 = vsub.f32 %v453, %v688
    %v885 = vsub.f32 %v457, %v692
    %v886 = vsub.f32 %v463, %v698
    %v887 = vsub.f32 %v467, %v702
    %v888 = vsub.f32 %v473, %v708
    %v889 = vsub.f32 %v477, %v712
    %v890 = vsub.f32 %v483, %v718
    %v891 = vsub.f32 %v487, %v722
    %v892 = vsub.f32 %v493, %v728
    %v893 = vsub.f32 %v497, %v732
    %v894 = vsub.f32 %v503, %v738
    %v895 = vsub.f32 %v507, %v742
    %v896 = vsub.f32 %v513, %v748
    %v897 = vsub.f32 %v517, %v752
    %v898 = vsub.f32 %v523, %v758
    %v899 = vsub.f32 %v527, %v762
    %v900 = vsub.f32 %v533, %v768
    %v901 = vsub.f32 %v537, %v772
    %v902 = vsub.f32 %v543, %v778
    %v903 = vsub.f32 %v547, %v782
    %v904 = vsub.f32 %v553, %v788
    %v905 = vsub.f32 %v557, %v792
    %v906 = vsub.f32 %v563, %v798
    %v907 = vsub.f32 %v567, %v802
    %v908 = vsub.f32 %v573, %v808
    %v909 = vsub.f32 %v577, %v812
    %v910 = vsub.f32 %v583, %v818
    %v911 = vsub.f32 %v587, %v822
    %v912 = vsub.f32 %v593, %v828
    %v913 = vsub.f32 %v597, %v832
    %v914 = vsub.f32 %v603, %v838
    %v915 = vsub.f32 %v607, %v842
    %v916 = vsub.f32 %v613, %v848
    %v917 = vsub.f32 %v617, %v852
    %v918 = vsub.f32 %v623, %v858
    %v919 = vsub.f32 %v627, %v862
    %v920 = vsub.f32 %v633, %v868
    %v921 = vsub.f32 %v637, %v872
    %v922 = vsub.f32 %v643, %v878
    %v923 = vsub.f32 %v647, %v882
    %v924 = vmul.f32 %v884, 0.0078125
    %v925 = vmul.f32 %v885, 0.0078125
    %v926 = vmul.f32 %v886, 0.0078125
    %v927 = vmul.f32 %v887, 0.0078125
    %v928 = vmul.f32 %v888, 0.0078125
    %v929 = vmul.f32 %v889, 0.0078125
    %v930 = vmul.f32 %v890, 0.0078125
    %v931 = vmul.f32 %v891, 0.0078125
    %v932 = vmul.f32 %v892, 0.0078125
    %v933 = vmul.f32 %v893, 0.0078125
    %v934 = vmul.f32 %v894, 0.0078125
    %v935 = vmul.f32 %v895, 0.0078125
    %v936 = vmul.f32 %v896, 0.0078125
    %v937 = vmul.f32 %v897, 0.0078125
    %v938 = vmul.f32 %v898, 0.0078125
    %v939 = vmul.f32 %v899, 0.0078125
    %v940 = vmul.f32 %v900, 0.0078125
    %v941 = vmul.f32 %v901, 0.0078125
    %v942 = vmul.f32 %v902, 0.0078125
    %v943 = vmul.f32 %v903, 0.0078125
    %v944 = vmul.f32 %v904, 0.0078125
    %v945 = vmul.f32 %v905, 0.0078125
    %v946 = vmul.f32 %v906, 0.0078125
    %v947 = vmul.f32 %v907, 0.0078125
    %v948 = vmul.f32 %v908, 0.0078125
    %v949 = vmul.f32 %v909, 0.0078125
    %v950 = vmul.f32 %v910, 0.0078125
    %v951 = vmul.f32 %v911, 0.0078125
    %v952 = vmul.f32 %v912, 0.0078125
    %v953 = vmul.f32 %v913, 0.0078125
    %v954 = vmul.f32 %v914, 0.0078125
    %v955 = vmul.f32 %v915, 0.0078125
    %v956 = vmul.f32 %v916, 0.0078125
    %v957 = vmul.f32 %v917, 0.0078125
    %v958 = vmul.f32 %v918, 0.0078125
    %v959 = vmul.f32 %v919, 0.0078125
    %v960 = vmul.f32 %v920, 0.0078125
    %v961 = vmul.f32 %v921, 0.0078125
    %v962 = vmul.f32 %v922, 0.0078125
    %v963 = vmul.f32 %v923, 0.0078125
    %964 = vst [vmem:[#allocation8] sm:$0xff] %v924
    %965 = vst [vmem:[#allocation8 + $0x8] sm:$0xff] %v925
    %966 = vst [vmem:[#allocation8 + $0x10] sm:$0xff] %v926
    %967 = vst [vmem:[#allocation8 + $0x18] sm:$0xff] %v927
    %968 = vst [vmem:[#allocation8 + $0x20] sm:$0xff] %v928
    %969 = vst [vmem:[#allocation8 + $0x28] sm:$0xff] %v929
    %970 = vst [vmem:[#allocation8 + $0x30] sm:$0xff] %v930
    %971 = vst [vmem:[#allocation8 + $0x38] sm:$0xff] %v931
    %972 = vst [vmem:[#allocation8 + $0x40] sm:$0xff] %v932
    %973 = vst [vmem:[#allocation8 + $0x48] sm:$0xff] %v933
    %974 = vst [vmem:[#allocation8 + $0x50] sm:$0xff] %v934
    %975 = vst [vmem:[#allocation8 + $0x58] sm:$0xff] %v935
    %976 = vst [vmem:[#allocation8 + $0x60] sm:$0xff] %v936
    %977 = vst [vmem:[#allocation8 + $0x68] sm:$0xff] %v937
    %978 = vst [vmem:[#allocation8 + $0x70] sm:$0xff] %v938
    %979 = vst [vmem:[#allocation8 + $0x78] sm:$0xff] %v939
    %980 = vst [vmem:[#allocation8 + $0x80] sm:$0xff] %v940
    %981 = vst [vmem:[#allocation8 + $0x88] sm:$0xff] %v941
    %982 = vst [vmem:[#allocation8 + $0x90] sm:$0xff] %v942
    %983 = vst [vmem:[#allocation8 + $0x98] sm:$0xff] %v943
    %984 = vst [vmem:[#allocation8 + $0xa0] sm:$0xff] %v944
    %985 = vst [vmem:[#allocation8 + $0xa8] sm:$0xff] %v945
    %986 = vst [vmem:[#allocation8 + $0xb0] sm:$0xff] %v946
    %987 = vst [vmem:[#allocation8 + $0xb8] sm:$0xff] %v947
    %988 = vst [vmem:[#allocation8 + $0xc0] sm:$0xff] %v948
    %989 = vst [vmem:[#allocation8 + $0xc8] sm:$0xff] %v949
    %990 = vst [vmem:[#allocation8 + $0xd0] sm:$0xff] %v950
    %991 = vst [vmem:[#allocation8 + $0xd8] sm:$0xff] %v951
    %992 = vst [vmem:[#allocation8 + $0xe0] sm:$0xff] %v952
    %993 = vst [vmem:[#allocation8 + $0xe8] sm:$0xff] %v953
    %994 = vst [vmem:[#allocation8 + $0xf0] sm:$0xff] %v954
    %995 = vst [vmem:[#allocation8 + $0xf8] sm:$0xff] %v955
    %996 = vst [vmem:[#allocation8 + $0x100] sm:$0xff] %v956
    %997 = vst [vmem:[#allocation8 + $0x108] sm:$0xff] %v957
    %998 = vst [vmem:[#allocation8 + $0x110] sm:$0xff] %v958
    %999 = vst [vmem:[#allocation8 + $0x118] sm:$0xff] %v959
    %1000 = vst [vmem:[#allocation8 + $0x120] sm:$0xff] %v960
    %1001 = vst [vmem:[#allocation8 + $0x128] sm:$0xff] %v961
    %1002 = vst [vmem:[#allocation8 + $0x130] sm:$0xff] %v962
    %1003 = vst [vmem:[#allocation8 + $0x138] sm:$0xff] %v963
    %v1004 = vadd.f32 %v455, %v686
    %v1005 = vadd.f32 %v459, %v690
    %v1006 = vadd.f32 %v465, %v696
    %v1007 = vadd.f32 %v469, %v700
    %v1008 = vadd.f32 %v475, %v706
    %v1009 = vadd.f32 %v479, %v710
    %v1010 = vadd.f32 %v485, %v716
    %v1011 = vadd.f32 %v489, %v720
    %v1012 = vadd.f32 %v495, %v726
    %v1013 = vadd.f32 %v499, %v730
    %v1014 = vadd.f32 %v505, %v736
    %v1015 = vadd.f32 %v509, %v740
    %v1016 = vadd.f32 %v515, %v746
    %v1017 = vadd.f32 %v519, %v750
    %v1018 = vadd.f32 %v525, %v756
    %v1019 = vadd.f32 %v529, %v760
    %v1020 = vadd.f32 %v535, %v766
    %v1021 = vadd.f32 %v539, %v770
    %v1022 = vadd.f32 %v545, %v776
    %v1023 = vadd.f32 %v549, %v780
    %v1024 = vadd.f32 %v555, %v786
    %v1025 = vadd.f32 %v559, %v790
    %v1026 = vadd.f32 %v565, %v796
    %v1027 = vadd.f32 %v569, %v800
    %v1028 = vadd.f32 %v575, %v806
    %v1029 = vadd.f32 %v579, %v810
    %v1030 = vadd.f32 %v585, %v816
    %v1031 = vadd.f32 %v589, %v820
    %v1032 = vadd.f32 %v595, %v826
    %v1033 = vadd.f32 %v599, %v830
    %v1034 = vadd.f32 %v605, %v836
    %v1035 = vadd.f32 %v609, %v840
    %v1036 = vadd.f32 %v615, %v846
    %v1037 = vadd.f32 %v619, %v850
    %v1038 = vadd.f32 %v625, %v856
    %v1039 = vadd.f32 %v629, %v860
    %v1040 = vadd.f32 %v635, %v866
    %v1041 = vadd.f32 %v639, %v870
    %v1042 = vadd.f32 %v645, %v876
    %v1043 = vadd.f32 %v649, %v880
    %v1044 = vmul.f32 %v1004, 0.0078125
    %v1045 = vmul.f32 %v1005, 0.0078125
    %v1046 = vmul.f32 %v1006, 0.0078125
    %v1047 = vmul.f32 %v1007, 0.0078125
    %v1048 = vmul.f32 %v1008, 0.0078125
    %v1049 = vmul.f32 %v1009, 0.0078125
    %v1050 = vmul.f32 %v1010, 0.0078125
    %v1051 = vmul.f32 %v1011, 0.0078125
    %v1052 = vmul.f32 %v1012, 0.0078125
    %v1053 = vmul.f32 %v1013, 0.0078125
    %v1054 = vmul.f32 %v1014, 0.0078125
    %v1055 = vmul.f32 %v1015, 0.0078125
    %v1056 = vmul.f32 %v1016, 0.0078125
    %v1057 = vmul.f32 %v1017, 0.0078125
    %v1058 = vmul.f32 %v1018, 0.0078125
    %v1059 = vmul.f32 %v1019, 0.0078125
    %v1060 = vmul.f32 %v1020, 0.0078125
    %v1061 = vmul.f32 %v1021, 0.0078125
    %v1062 = vmul.f32 %v1022, 0.0078125
    %v1063 = vmul.f32 %v1023, 0.0078125
    %v1064 = vmul.f32 %v1024, 0.0078125
    %v1065 = vmul.f32 %v1025, 0.0078125
    %v1066 = vmul.f32 %v1026, 0.0078125
    %v1067 = vmul.f32 %v1027, 0.0078125
    %v1068 = vmul.f32 %v1028, 0.0078125
    %v1069 = vmul.f32 %v1029, 0.0078125
    %v1070 = vmul.f32 %v1030, 0.0078125
    %v1071 = vmul.f32 %v1031, 0.0078125
    %v1072 = vmul.f32 %v1032, 0.0078125
    %v1073 = vmul.f32 %v1033, 0.0078125
    %v1074 = vmul.f32 %v1034, 0.0078125
    %v1075 = vmul.f32 %v1035, 0.0078125
    %v1076 = vmul.f32 %v1036, 0.0078125
    %v1077 = vmul.f32 %v1037, 0.0078125
    %v1078 = vmul.f32 %v1038, 0.0078125
    %v1079 = vmul.f32 %v1039, 0.0078125
    %v1080 = vmul.f32 %v1040, 0.0078125
    %v1081 = vmul.f32 %v1041, 0.0078125
    %v1082 = vmul.f32 %v1042, 0.0078125
    %v1083 = vmul.f32 %v1043, 0.0078125
    %1084 = vst [vmem:[#allocation9] sm:$0xff] %v1044
    %1085 = vst [vmem:[#allocation9 + $0x8] sm:$0xff] %v1045
    %1086 = vst [vmem:[#allocation9 + $0x10] sm:$0xff] %v1046
    %1087 = vst [vmem:[#allocation9 + $0x18] sm:$0xff] %v1047
    %1088 = vst [vmem:[#allocation9 + $0x20] sm:$0xff] %v1048
    %1089 = vst [vmem:[#allocation9 + $0x28] sm:$0xff] %v1049
    %1090 = vst [vmem:[#allocation9 + $0x30] sm:$0xff] %v1050
    %1091 = vst [vmem:[#allocation9 + $0x38] sm:$0xff] %v1051
    %1092 = vst [vmem:[#allocation9 + $0x40] sm:$0xff] %v1052
    %1093 = vst [vmem:[#allocation9 + $0x48] sm:$0xff] %v1053
    %1094 = vst [vmem:[#allocation9 + $0x50] sm:$0xff] %v1054
    %1095 = vst [vmem:[#allocation9 + $0x58] sm:$0xff] %v1055
    %1096 = vst [vmem:[#allocation9 + $0x60] sm:$0xff] %v1056
    %1097 = vst [vmem:[#allocation9 + $0x68] sm:$0xff] %v1057
    %1098 = vst [vmem:[#allocation9 + $0x70] sm:$0xff] %v1058
    %1099 = vst [vmem:[#allocation9 + $0x78] sm:$0xff] %v1059
    %1100 = vst [vmem:[#allocation9 + $0x80] sm:$0xff] %v1060
    %1101 = vst [vmem:[#allocation9 + $0x88] sm:$0xff] %v1061
    %1102 = vst [vmem:[#allocation9 + $0x90] sm:$0xff] %v1062
    %1103 = vst [vmem:[#allocation9 + $0x98] sm:$0xff] %v1063
    %1104 = vst [vmem:[#allocation9 + $0xa0] sm:$0xff] %v1064
    %1105 = vst [vmem:[#allocation9 + $0xa8] sm:$0xff] %v1065
    %1106 = vst [vmem:[#allocation9 + $0xb0] sm:$0xff] %v1066
    %1107 = vst [vmem:[#allocation9 + $0xb8] sm:$0xff] %v1067
    %1108 = vst [vmem:[#allocation9 + $0xc0] sm:$0xff] %v1068
    %1109 = vst [vmem:[#allocation9 + $0xc8] sm:$0xff] %v1069
    %1110 = vst [vmem:[#allocation9 + $0xd0] sm:$0xff] %v1070
    %1111 = vst [vmem:[#allocation9 + $0xd8] sm:$0xff] %v1071
    %1112 = vst [vmem:[#allocation9 + $0xe0] sm:$0xff] %v1072
    %1113 = vst [vmem:[#allocation9 + $0xe8] sm:$0xff] %v1073
    %1114 = vst [vmem:[#allocation9 + $0xf0] sm:$0xff] %v1074
    %1115 = vst [vmem:[#allocation9 + $0xf8] sm:$0xff] %v1075
    %1116 = vst [vmem:[#allocation9 + $0x100] sm:$0xff] %v1076
    %1117 = vst [vmem:[#allocation9 + $0x108] sm:$0xff] %v1077
    %1118 = vst [vmem:[#allocation9 + $0x110] sm:$0xff] %v1078
    %1119 = vst [vmem:[#allocation9 + $0x118] sm:$0xff] %v1079
    %1120 = vst [vmem:[#allocation9 + $0x120] sm:$0xff] %v1080
    %1121 = vst [vmem:[#allocation9 + $0x128] sm:$0xff] %v1081
    %1122 = vst [vmem:[#allocation9 + $0x130] sm:$0xff] %v1082
    %1123 = vst [vmem:[#allocation9 + $0x138] sm:$0xff] %v1083
    // Predicated region
    $region26: #{tpu_custom_call.1} parent=1 // pred_check
      _
    $region27: #{tpu_custom_call.1} parent=1 // pred_check_branch
      %1125 = sbr.rel (0) target = $region29
    $region28: #{tpu_custom_call.1} parent=1 // pred_region
      %s1127 = ssub.s32 5120, 5120
      %1128 = vsyncadd [#allocation4], %s1127
      %s1129 = sshll.u32 [#allocation8], 4
      %s1130 = int_to_ptr.vmem [resolvable:$true] %s1129
      %1135 = dma.vmem_to_hbm [thread:$0]  %s1130, 5120, %s3, [#allocation4], 128, 128, 8
    $region29: #{tpu_custom_call.1} parent=1 // pred_fallthru
      _
    // Predicated region
    $region30: #{tpu_custom_call.1} parent=1 // pred_check
      _
    $region31: #{tpu_custom_call.1} parent=1 // pred_check_branch
      %1137 = sbr.rel (0) target = $region33
    $region32: #{tpu_custom_call.1} parent=1 // pred_region
      %s1139 = ssub.s32 5120, 5120
      %1140 = vsyncadd [#allocation10], %s1139
      %s1141 = sshll.u32 [#allocation9], 4
      %s1142 = int_to_ptr.vmem [resolvable:$true] %s1141
      %1147 = dma.vmem_to_hbm [thread:$0]  %s1142, 5120, %s4, [#allocation10], 128, 128, 8
    $region33: #{tpu_custom_call.1} parent=1 // pred_fallthru
      _
    // Predicated region
    $region34: #{tpu_custom_call.1} parent=1 // pred_check
      _
    $region35: #{tpu_custom_call.1} parent=1 // pred_check_branch
      %1149 = sbr.rel (0) target = $region37
    $region36: #{tpu_custom_call.1} parent=1 // pred_region
      %1150 = dma.done [#allocation4], 5120
    $region37: #{tpu_custom_call.1} parent=1 // pred_fallthru
      _
    // Predicated region
    $region38: #{tpu_custom_call.1} parent=1 // pred_check
      _
    $region39: #{tpu_custom_call.1} parent=1 // pred_check_branch
      %1152 = sbr.rel (0) target = $region41
    $region40: #{tpu_custom_call.1} parent=1 // pred_region
      %1153 = dma.done [#allocation10], 5120
    $region41: #{tpu_custom_call.1} parent=1 // pred_fallthru
      _
    %1154 = vsyncpa [#allocation3], 1
    %1155 = vsyncpa [#allocation6], 1
    %1156 = vsyncpa [#allocation4], 1
    %1157 = vsyncpa [#allocation10], 1

</llo_original>
